<compile_context>
chip_gen: v5e
topology: v5e:2x2
jax: 0.10.0
libtpu: 0.0.40
codegen_flags: <defaults>
</compile_context>

<pallas_src>
import jax
import jax.numpy as jnp
from jax import lax
from jax.experimental import pallas as pl
from jax.experimental.pallas import tpu as pltpu


def _round_up(x, m):
    return ((x + m - 1) // m) * m


def _static_int(x, fallback):
    """Concrete int if available (wrapper called with concrete offsets), else a
    static safe upper bound (when traced under jit)."""
    try:
        return int(x)
    except Exception:
        return int(fallback)


def _text_cls_kernel(binfo_ref, starts_ref, counts_ref, invc_ref,
                     e_ref, wfc_ref, bfc_ref, wcls_ref, bcls_ref,
                     o_ref, acc_ref):
    i = pl.program_id(0)
    k = pl.program_id(1)
    tm = acc_ref.shape[0]
    tk = e_ref.shape[0]

    @pl.when(k == 0)
    def _():
        acc_ref[...] = jnp.zeros_like(acc_ref)

    n_blk = binfo_ref[i, 1]          # number of seq blocks this tile touches

    @pl.when(k < n_blk)
    def _():
        # Bag-membership mask for this (batch-tile, seq-block), built on the
        # fly.  Unsigned-range trick: 0 <= col - start < count.
        base = (binfo_ref[i, 0] + k) * tk                     # scalar
        col = lax.broadcasted_iota(jnp.int32, (tm, tk), 1)
        delta = col + (base - starts_ref[...])                # [tm, tk] int32
        mask = pltpu.bitcast(delta, jnp.uint32) < counts_ref[...]
        # Segment-sum of gathered embeddings on the MXU (bf16 in, f32 acc).
        acc_ref[...] += jnp.dot(mask.astype(jnp.bfloat16), e_ref[...],
                                preferred_element_type=jnp.float32)

    @pl.when(k == pl.num_programs(1) - 1)
    def _():
        # EmbeddingBag(mode="mean"): scale once per pooled row, in f32.
        pooled = acc_ref[...] * invc_ref[...]                 # [tm, D] f32
        h = jnp.dot(pooled.astype(jnp.bfloat16), wfc_ref[...],
                    preferred_element_type=jnp.float32) + bfc_ref[...]
        h = jnp.where(h > 0, h, 0.01 * h)                     # F.leaky_relu
        out = jnp.dot(h.astype(jnp.bfloat16), wcls_ref[...],
                      preferred_element_type=jnp.float32) + bcls_ref[...]
        o_ref[...] = out.astype(o_ref.dtype)


def text_classification_forward(text, offsets, emb_weight, w_fc, b_fc,
                                w_cls, b_cls, *, tm_max=128, tk_max=1024):
    """Mirrors TextClassificationModel.forward(text, offsets)."""
    seq = int(text.shape[0])
    batch = int(offsets.shape[0])
    embed_dim = emb_weight.shape[1]
    num_class = w_cls.shape[0]

    # ---- tile / padding choices (lane-dense, MXU friendly) ------------------
    d_pad = _round_up(embed_dim, 128)            # lane dim of E / fc
    c_pad = _round_up(num_class, 128)            # lane dim of output

    # Batch tile: multiple of 16 (bf16 mask sublane packing); cap 256 for big
    # batches (fills MXU M on v6e/v7x); prefer >= 2 tiles for v7x megacore.
    tm_cap = 256 if batch >= 256 else tm_max
    tm = min(tm_cap, _round_up(batch, 16))
    if _round_up(batch, tm) // tm < 2 and batch > 16:
        tm = max(16, _round_up((batch + 1) // 2, 16))
    b_pad = _round_up(batch, tm)
    n_bt = b_pad // tm

    # Seq (reduction) tile: multiple of 256 fills the 2x256^2 MXU K dim and
    # keeps the (tk, d_pad) bf16 E tile a legal sublane multiple.
    tk = min(_round_up(tk_max, 256), _round_up(seq, 256))
    s_pad = _round_up(seq, tk)
    s_blocks = s_pad // tk

    # ---- per-bag scalars (no dense pooling matrix ever touches HBM) ---------
    offsets = offsets.astype(jnp.int32)
    starts = offsets
    ends = jnp.concatenate([offsets[1:], jnp.array([seq], jnp.int32)])
    counts = ends - starts
    inv_cnt = 1.0 / jnp.maximum(counts.astype(jnp.float32), 1.0)

    # Padded bags: start = seq, count = 0 -> empty mask, and they never widen
    # a tile's seq band.
    starts_p = jnp.full((b_pad,), seq, jnp.int32).at[:batch].set(starts)
    counts_p = jnp.zeros((b_pad,), jnp.int32).at[:batch].set(counts)
    ends_p = starts_p + counts_p
    invc_p = jnp.zeros((b_pad,), jnp.float32).at[:batch].set(inv_cnt)

    starts2d = starts_p[:, None]
    counts2d = counts_p.astype(jnp.uint32)[:, None]
    invc2d = invc_p[:, None]

    # ---- per-batch-tile seq band (scalar prefetch) ---------------------------
    t_start = jnp.min(starts_p.reshape(n_bt, tm), axis=1)
    t_end = jnp.max(ends_p.reshape(n_bt, tm), axis=1)
    blk_start = jnp.minimum(t_start // tk, s_blocks - 1)
    blk_end = (t_end + tk - 1) // tk
    blk_count = jnp.clip(blk_end - blk_start, 0, s_blocks)
    binfo = jnp.stack([blk_start, blk_count], axis=1).astype(jnp.int32)

    n_kt = max(1, min(_static_int(jnp.max(blk_count), s_blocks), s_blocks))
    k_steps = min(_static_int(jnp.sum(blk_count), n_bt * n_kt), n_bt * n_kt)

    # ---- gathered embeddings + padded weights --------------------------------
    gathered = emb_weight[text].astype(jnp.bfloat16)                  # [S, D]
    e_pad = jnp.zeros((s_pad, d_pad), jnp.bfloat16)
    e_pad = e_pad.at[:seq, :embed_dim].set(gathered)

    wfc = jnp.zeros((d_pad, d_pad), jnp.bfloat16)
    wfc = wfc.at[:embed_dim, :embed_dim].set(w_fc.T.astype(jnp.bfloat16))
    bfc = jnp.zeros((1, d_pad), jnp.float32).at[0, :embed_dim].set(b_fc)
    wcls = jnp.zeros((d_pad, c_pad), jnp.bfloat16)
    wcls = wcls.at[:embed_dim, :num_class].set(w_cls.T.astype(jnp.bfloat16))
    bcls = jnp.zeros((1, c_pad), jnp.float32).at[0, :num_class].set(b_cls)

    # ---- VMEM budget + advisory cost ------------------------------------------
    vmem_need = (2 * tk * d_pad * 2                          # E (dbl-buffered)
                 + 2 * (d_pad * d_pad + d_pad * c_pad) * 2   # W_fc, W_cls
                 + 2 * (d_pad + c_pad) * 4                   # biases
                 + 3 * 2 * tm * 128 * 4                      # per-row scalars
                 + tm * d_pad * 4                            # acc scratch
                 + 2 * tm * c_pad * 4)                       # output
    vmem_limit = int(min(64 * 2 ** 20, max(32 * 2 ** 20, 2 * vmem_need)))

    flops = (2 * tm * tk * d_pad * k_steps
             + 2 * b_pad * (d_pad * d_pad + d_pad * c_pad))
    bytes_accessed = (k_steps * tk * d_pad * 2
                      + (wfc.size + wcls.size) * 2 + (bfc.size + bcls.size) * 4
                      + (starts2d.size + counts2d.size + invc2d.size
                         + binfo.size) * 4
                      + b_pad * c_pad * 4)

    out = pl.pallas_call(
        _text_cls_kernel,
        out_shape=jax.ShapeDtypeStruct((b_pad, c_pad), jnp.float32),
        grid_spec=pltpu.PrefetchScalarGridSpec(
            num_scalar_prefetch=1,
            grid=(n_bt, n_kt),
            in_specs=[
                pl.BlockSpec((tm, 1), lambda i, k, binfo: (i, 0)),     # starts
                pl.BlockSpec((tm, 1), lambda i, k, binfo: (i, 0)),     # counts
                pl.BlockSpec((tm, 1), lambda i, k, binfo: (i, 0)),     # 1/count
                pl.BlockSpec((tk, d_pad),                              # E band tile
                             lambda i, k, binfo: (
                                 jnp.minimum(binfo[i, 0] + k, s_blocks - 1), 0)),
                pl.BlockSpec((d_pad, d_pad), lambda i, k, binfo: (0, 0)),  # W_fc
                pl.BlockSpec((1, d_pad), lambda i, k, binfo: (0, 0)),      # b_fc
                pl.BlockSpec((d_pad, c_pad), lambda i, k, binfo: (0, 0)),  # W_cls
                pl.BlockSpec((1, c_pad), lambda i, k, binfo: (0, 0)),      # b_cls
            ],
            out_specs=pl.BlockSpec((tm, c_pad), lambda i, k, binfo: (i, 0)),
            scratch_shapes=[pltpu.VMEM((tm, d_pad), jnp.float32)],
        ),
        compiler_params=pltpu.CompilerParams(
            dimension_semantics=("parallel", "arbitrary"),
            vmem_limit_bytes=vmem_limit),
        cost_estimate=pl.CostEstimate(
            flops=flops, transcendentals=0, bytes_accessed=bytes_accessed),
    )(binfo, starts2d, counts2d, invc2d, e_pad, wfc, bfc, wcls, bcls)

    return out[:batch, :num_class]


def _reference_forward(text, offsets, emb_weight, w_fc, b_fc, w_cls, b_cls):
    # Pure-JAX (f32) reference for a sanity check.
    seq = text.shape[0]
    gathered = emb_weight[text]
    starts = offsets
    ends = jnp.concatenate([offsets[1:], jnp.array([seq], offsets.dtype)])
    t = jnp.arange(seq, dtype=offsets.dtype)
    mask = (t[None, :] >= starts[:, None]) & (t[None, :] < ends[:, None])
    counts = (ends - starts).astype(jnp.float32)
    pool = mask.astype(jnp.float32) / jnp.maximum(counts, 1.0)[:, None]
    embedded = pool @ gathered
    x = embedded @ w_fc.T + b_fc
    x = jnp.where(x > 0, x, 0.01 * x)
    return x @ w_cls.T + b_cls


if __name__ == "__main__":
    # Small deterministic config
    vocab_size, embed_dim, num_class = 100, 32, 8
    batch, seq = 4, 24

    key = jax.random.PRNGKey(0)
    k_emb, k_fc, k_cls, k_text = jax.random.split(key, 4)

    initrange = 0.5
    emb_weight = jax.random.uniform(k_emb, (vocab_size, embed_dim), jnp.float32,
                                    -initrange, initrange)
    w_fc = jax.random.uniform(k_fc, (embed_dim, embed_dim), jnp.float32,
                              -initrange, initrange)
    b_fc = jnp.zeros((embed_dim,), jnp.float32)
    w_cls = jax.random.uniform(k_cls, (num_class, embed_dim), jnp.float32,
                               -initrange, initrange)
    b_cls = jnp.zeros((num_class,), jnp.float32)

    text = jax.random.randint(k_text, (seq,), 0, vocab_size, dtype=jnp.int32)
    # 4 bags of lengths 6, 5, 7, 6
    offsets = jnp.array([0, 6, 11, 18], dtype=jnp.int32)

    out = text_classification_forward(text, offsets, emb_weight, w_fc, b_fc,
                                      w_cls, b_cls)
    jax.block_until_ready(out)

    ref = _reference_forward(text, offsets, emb_weight, w_fc, b_fc, w_cls, b_cls)
    assert out.shape == (batch, num_class)
    # Kernel uses bf16 MXU operands with f32 accumulation -> tolerance is
    # loosened vs. a pure-f32 reference.
    assert jnp.allclose(out, ref, atol=2e-2, rtol=2e-2), \
        float(jnp.max(jnp.abs(out - ref)))

    print("KERNEL_OK")
</pallas_src>

<mosaic_0001>
module attributes {stable_mosaic.version = 11 : i64} {
  func.func @_text_cls_kernel(%arg0: i32, %arg1: i32, %arg2: memref<1x2xi32, #tpu.memory_space<smem>>, %arg3: memref<16x1xi32, #tpu.memory_space<vmem>>, %arg4: memref<16x1xi32, #tpu.memory_space<vmem>>, %arg5: memref<16x1xf32, #tpu.memory_space<vmem>>, %arg6: memref<256x128xbf16, #tpu.memory_space<vmem>>, %arg7: memref<128x128xbf16, #tpu.memory_space<vmem>>, %arg8: memref<1x128xf32, #tpu.memory_space<vmem>>, %arg9: memref<128x128xbf16, #tpu.memory_space<vmem>>, %arg10: memref<1x128xf32, #tpu.memory_space<vmem>>, %arg11: memref<16x128xf32, #tpu.memory_space<vmem>>, %arg12: memref<16x128xf32, #tpu.memory_space<vmem>>) attributes {dimension_semantics = [#tpu.dimension_semantics<parallel>, #tpu.dimension_semantics<arbitrary>], iteration_bounds = array<i64: 1, 1>, scalar_prefetch = 1 : i64, scratch_operands = 1 : i64, tpu.core_type = #tpu.core_type<tc>, window_params = [{transform_indices = @transform_0, window_bounds = array<i64: 16, 1>}, {transform_indices = @transform_1, window_bounds = array<i64: 16, 1>}, {transform_indices = @transform_2, window_bounds = array<i64: 16, 1>}, {transform_indices = @transform_3, window_bounds = array<i64: 256, 128>}, {pipeline_mode = #tpu.pipeline_mode<synchronous>, transform_indices = @transform_4, window_bounds = array<i64: 128, 128>}, {pipeline_mode = #tpu.pipeline_mode<synchronous>, transform_indices = @transform_5, window_bounds = array<i64: 1, 128>}, {pipeline_mode = #tpu.pipeline_mode<synchronous>, transform_indices = @transform_6, window_bounds = array<i64: 128, 128>}, {pipeline_mode = #tpu.pipeline_mode<synchronous>, transform_indices = @transform_7, window_bounds = array<i64: 1, 128>}, {transform_indices = @transform_8, window_bounds = array<i64: 16, 128>}]} {
    %c0_i32 = arith.constant 0 : i32
    %0 = arith.cmpi eq, %arg1, %c0_i32 : i32
    %1 = arith.extui %0 : i1 to i32
    %c0_i32_0 = arith.constant 0 : i32
    %2 = arith.cmpi ne, %1, %c0_i32_0 : i32
    scf.if %2 {
      %cst = arith.constant 0.000000e+00 : f32
      %11 = vector.broadcast %cst : f32 to vector<16x128xf32>
      %c0 = arith.constant 0 : index
      %c0_4 = arith.constant 0 : index
      %12 = vector.load %arg12[%c0, %c0_4] : memref<16x128xf32, #tpu.memory_space<vmem>>, vector<16x128xf32>
      tpu.vector_store %arg12[%c0, %c0_4], %11 {strides = array<i32>} : memref<16x128xf32, #tpu.memory_space<vmem>>, vector<16x128xf32>,
    } else {
    }
    %3 = arith.index_cast %arg0 : i32 to index
    %c1 = arith.constant 1 : index
    %4 = memref.load %arg2[%3, %c1] : memref<1x2xi32, #tpu.memory_space<smem>>
    %5 = arith.cmpi slt, %arg1, %4 : i32
    %6 = arith.extui %5 : i1 to i32
    %c0_i32_1 = arith.constant 0 : i32
    %7 = arith.cmpi ne, %6, %c0_i32_1 : i32
    scf.if %7 {
      %11 = arith.index_cast %arg0 : i32 to index
      %c0 = arith.constant 0 : index
      %12 = memref.load %arg2[%11, %c0] : memref<1x2xi32, #tpu.memory_space<smem>>
      %13 = arith.addi %12, %arg1 : i32
      %c256_i32 = arith.constant 256 : i32
      %14 = arith.muli %13, %c256_i32 : i32
      %15 = tpu.iota {dimensions = array<i32: 1>} : vector<16x256xi32>
      %c0_4 = arith.constant 0 : index
      %c0_5 = arith.constant 0 : index
      %16 = vector.load %arg3[%c0_4, %c0_5] : memref<16x1xi32, #tpu.memory_space<vmem>>, vector<16x1xi32>
      %17 = vector.broadcast %14 : i32 to vector<16x1xi32>
      %18 = arith.subi %17, %16 : vector<16x1xi32>
      %19 = vector.broadcast %18 : vector<16x1xi32> to vector<16x256xi32>
      %20 = arith.addi %15, %19 : vector<16x256xi32>
      %21 = tpu.bitcast %20 : vector<16x256xi32> -> vector<16x256xi32>
      %c0_6 = arith.constant 0 : index
      %c0_7 = arith.constant 0 : index
      %22 = vector.load %arg4[%c0_6, %c0_7] : memref<16x1xi32, #tpu.memory_space<vmem>>, vector<16x1xi32>
      %23 = vector.broadcast %22 : vector<16x1xi32> to vector<16x256xi32>
      %24 = arith.cmpi ult, %21, %23 : vector<16x256xi32>
      %c0_8 = arith.constant 0 : index
      %c0_9 = arith.constant 0 : index
      %25 = vector.load %arg12[%c0_8, %c0_9] : memref<16x128xf32, #tpu.memory_space<vmem>>, vector<16x128xf32>
      %26 = arith.extui %24 : vector<16x256xi1> to vector<16x256xi32>
      %27 = arith.sitofp %26 : vector<16x256xi32> to vector<16x256xf32>
      %28 = arith.truncf %27 : vector<16x256xf32> to vector<16x256xbf16>
      %c0_10 = arith.constant 0 : index
      %c0_11 = arith.constant 0 : index
      %29 = vector.load %arg6[%c0_10, %c0_11] : memref<256x128xbf16, #tpu.memory_space<vmem>>, vector<256x128xbf16>
      %cst = arith.constant dense<0.000000e+00> : vector<16x128xf32>
      %30 = tpu.matmul %28, %29, %cst {dimension_numbers = #tpu.dot_dimension_numbers<[1], [0], [0], [1], [0, 0, 1, 1], [], []>} : vector<16x256xbf16>, vector<256x128xbf16>, vector<16x128xf32> -> vector<16x128xf32>
      %31 = arith.addf %25, %30 : vector<16x128xf32>
      %c0_12 = arith.constant 0 : index
      %c0_13 = arith.constant 0 : index
      %32 = vector.load %arg12[%c0_12, %c0_13] : memref<16x128xf32, #tpu.memory_space<vmem>>, vector<16x128xf32>
      tpu.vector_store %arg12[%c0_12, %c0_13], %31 {strides = array<i32>} : memref<16x128xf32, #tpu.memory_space<vmem>>, vector<16x128xf32>,
    } else {
    }
    %c0_i32_2 = arith.constant 0 : i32
    %8 = arith.cmpi eq, %arg1, %c0_i32_2 : i32
    %9 = arith.extui %8 : i1 to i32
    %c0_i32_3 = arith.constant 0 : i32
    %10 = arith.cmpi ne, %9, %c0_i32_3 : i32
    scf.if %10 {
      %c0 = arith.constant 0 : index
      %c0_4 = arith.constant 0 : index
      %11 = vector.load %arg12[%c0, %c0_4] : memref<16x128xf32, #tpu.memory_space<vmem>>, vector<16x128xf32>
      %c0_5 = arith.constant 0 : index
      %c0_6 = arith.constant 0 : index
      %12 = vector.load %arg5[%c0_5, %c0_6] : memref<16x1xf32, #tpu.memory_space<vmem>>, vector<16x1xf32>
      %13 = vector.broadcast %12 : vector<16x1xf32> to vector<16x128xf32>
      %14 = arith.mulf %11, %13 : vector<16x128xf32>
      %15 = arith.truncf %14 : vector<16x128xf32> to vector<16x128xbf16>
      %c0_7 = arith.constant 0 : index
      %c0_8 = arith.constant 0 : index
      %16 = vector.load %arg7[%c0_7, %c0_8] : memref<128x128xbf16, #tpu.memory_space<vmem>>, vector<128x128xbf16>
      %cst = arith.constant dense<0.000000e+00> : vector<16x128xf32>
      %17 = tpu.matmul %15, %16, %cst {dimension_numbers = #tpu.dot_dimension_numbers<[1], [0], [0], [1], [0, 0, 1, 1], [], []>} : vector<16x128xbf16>, vector<128x128xbf16>, vector<16x128xf32> -> vector<16x128xf32>
      %c0_9 = arith.constant 0 : index
      %c0_10 = arith.constant 0 : index
      %18 = vector.load %arg8[%c0_9, %c0_10] : memref<1x128xf32, #tpu.memory_space<vmem>>, vector<1x128xf32>
      %19 = vector.broadcast %18 : vector<1x128xf32> to vector<16x128xf32>
      %20 = arith.addf %17, %19 : vector<16x128xf32>
      %cst_11 = arith.constant 0.000000e+00 : f32
      %21 = vector.broadcast %cst_11 : f32 to vector<16x128xf32>
      %22 = arith.cmpf ogt, %20, %21 : vector<16x128xf32>
      %cst_12 = arith.constant 0.00999999977 : f32
      %23 = vector.broadcast %cst_12 : f32 to vector<16x128xf32>
      %24 = arith.mulf %23, %20 : vector<16x128xf32>
      %25 = arith.select %22, %20, %24 : vector<16x128xi1>, vector<16x128xf32>
      %26 = arith.truncf %25 : vector<16x128xf32> to vector<16x128xbf16>
      %c0_13 = arith.constant 0 : index
      %c0_14 = arith.constant 0 : index
      %27 = vector.load %arg9[%c0_13, %c0_14] : memref<128x128xbf16, #tpu.memory_space<vmem>>, vector<128x128xbf16>
      %cst_15 = arith.constant dense<0.000000e+00> : vector<16x128xf32>
      %28 = tpu.matmul %26, %27, %cst_15 {dimension_numbers = #tpu.dot_dimension_numbers<[1], [0], [0], [1], [0, 0, 1, 1], [], []>} : vector<16x128xbf16>, vector<128x128xbf16>, vector<16x128xf32> -> vector<16x128xf32>
      %c0_16 = arith.constant 0 : index
      %c0_17 = arith.constant 0 : index
      %29 = vector.load %arg10[%c0_16, %c0_17] : memref<1x128xf32, #tpu.memory_space<vmem>>, vector<1x128xf32>
      %30 = vector.broadcast %29 : vector<1x128xf32> to vector<16x128xf32>
      %31 = arith.addf %28, %30 : vector<16x128xf32>
      %c0_18 = arith.constant 0 : index
      %c0_19 = arith.constant 0 : index
      %32 = vector.load %arg11[%c0_18, %c0_19] : memref<16x128xf32, #tpu.memory_space<vmem>>, vector<16x128xf32>
      tpu.vector_store %arg11[%c0_18, %c0_19], %31 {strides = array<i32>} : memref<16x128xf32, #tpu.memory_space<vmem>>, vector<16x128xf32>,
    } else {
    }
    return
  }
  func.func @transform_0(%arg0: i32, %arg1: i32, %arg2: memref<1x2xi32, #tpu.memory_space<smem>>) -> (i32, i32) {
    %c0_i32 = arith.constant 0 : i32
    %c0_i32_0 = arith.constant 0 : i32
    return %arg0, %c0_i32 : i32, i32
  }
  func.func @transform_1(%arg0: i32, %arg1: i32, %arg2: memref<1x2xi32, #tpu.memory_space<smem>>) -> (i32, i32) {
    %c0_i32 = arith.constant 0 : i32
    %c0_i32_0 = arith.constant 0 : i32
    return %arg0, %c0_i32 : i32, i32
  }
  func.func @transform_2(%arg0: i32, %arg1: i32, %arg2: memref<1x2xi32, #tpu.memory_space<smem>>) -> (i32, i32) {
    %c0_i32 = arith.constant 0 : i32
    %c0_i32_0 = arith.constant 0 : i32
    return %arg0, %c0_i32 : i32, i32
  }
  func.func @transform_3(%arg0: i32, %arg1: i32, %arg2: memref<1x2xi32, #tpu.memory_space<smem>>) -> (i32, i32) {
    %0 = arith.index_cast %arg0 : i32 to index
    %c0 = arith.constant 0 : index
    %1 = memref.load %arg2[%0, %c0] : memref<1x2xi32, #tpu.memory_space<smem>>
    %2 = arith.addi %1, %arg1 : i32
    %c0_i32 = arith.constant 0 : i32
    %3 = arith.minsi %2, %c0_i32 : i32
    %c0_i32_0 = arith.constant 0 : i32
    %c0_i32_1 = arith.constant 0 : i32
    return %3, %c0_i32_0 : i32, i32
  }
  func.func @transform_4(%arg0: i32, %arg1: i32, %arg2: memref<1x2xi32, #tpu.memory_space<smem>>) -> (i32, i32) {
    %c0_i32 = arith.constant 0 : i32
    %c0_i32_0 = arith.constant 0 : i32
    %c0_i32_1 = arith.constant 0 : i32
    return %c0_i32, %c0_i32_0 : i32, i32
  }
  func.func @transform_5(%arg0: i32, %arg1: i32, %arg2: memref<1x2xi32, #tpu.memory_space<smem>>) -> (i32, i32) {
    %c0_i32 = arith.constant 0 : i32
    %c0_i32_0 = arith.constant 0 : i32
    %c0_i32_1 = arith.constant 0 : i32
    return %c0_i32, %c0_i32_0 : i32, i32
  }
  func.func @transform_6(%arg0: i32, %arg1: i32, %arg2: memref<1x2xi32, #tpu.memory_space<smem>>) -> (i32, i32) {
    %c0_i32 = arith.constant 0 : i32
    %c0_i32_0 = arith.constant 0 : i32
    %c0_i32_1 = arith.constant 0 : i32
    return %c0_i32, %c0_i32_0 : i32, i32
  }
  func.func @transform_7(%arg0: i32, %arg1: i32, %arg2: memref<1x2xi32, #tpu.memory_space<smem>>) -> (i32, i32) {
    %c0_i32 = arith.constant 0 : i32
    %c0_i32_0 = arith.constant 0 : i32
    %c0_i32_1 = arith.constant 0 : i32
    return %c0_i32, %c0_i32_0 : i32, i32
  }
  func.func @transform_8(%arg0: i32, %arg1: i32, %arg2: memref<1x2xi32, #tpu.memory_space<smem>>) -> (i32, i32) {
    %c0_i32 = arith.constant 0 : i32
    %c0_i32_0 = arith.constant 0 : i32
    return %arg0, %c0_i32 : i32, i32
  }
}

</mosaic_0001>

<llo_original>
// kernel: tpu_custom_call.1
$region0: #{tpu_custom_call.1}
  #allocation0 [shape = 'u32[]', space=smem, size = 0x4, offset = 0x4, fixed_abs, tag = 'smem constant byte address 0x4 - core index']
  #allocation1 [shape = 'u32[72,128]{1,0:T(1,128)}', space=vmem, size = 0x9000, scoped, tag = 'internal scratch']
  #allocation2 [shape = 'f32[16,128]{1,0:T(8,128)}', space=vmem, size = 0x2000, scoped, tag = 'scratch operand']
  #allocation3 [shape = 's32[1]{0}', space=sflag, size = 0x4, scoped, tag = 'scoped memory for tpu_custom_call.1']
  #allocation4 [shape = 'u8[512]{0}', space=smem, size = 0x200, scoped, tag = 'prefetched SMEM operand 0']
  %s0 = inlined_call_operand.vmem [shape: s32[1,2], index: 0, kind: input, shape index: {}]
  %s1 = inlined_call_operand.vmem [shape: s32[16,1], index: 1, kind: input, shape index: {}]
  %s2 = inlined_call_operand.vmem [shape: u32[16,1], index: 2, kind: input, shape index: {}]
  %s3 = inlined_call_operand.vmem [shape: f32[16,1], index: 3, kind: input, shape index: {}]
  %s4 = inlined_call_operand.hbm [shape: bf16[256,128], index: 4, kind: input, shape index: {}]
  %s5 = inlined_call_operand.hbm [shape: bf16[128,128], index: 5, kind: input, shape index: {}]
  %s6 = inlined_call_operand.vmem [shape: f32[1,128], index: 6, kind: input, shape index: {}]
  %s7 = inlined_call_operand.hbm [shape: bf16[128,128], index: 7, kind: input, shape index: {}]
  %s8 = inlined_call_operand.vmem [shape: f32[1,128], index: 8, kind: input, shape index: {}]
  %s9 = inlined_call_operand.hbm [shape: f32[16,128], index: 9, kind: output, shape index: {}]
  %s10 = sld [smem:[#allocation0]]
  $region66: #{tpu_custom_call.1} parent=0
    _
  %s12 = ssub.s32 1, %s10
  %s13 = scalar_select 0, %s12, %s10
  %s15 = sshll.u32 %s0, 4
  %s16 = int_to_ptr.vmem [resolvable:$true] %s15
  %18 = dma.vmem_to_smem %s16, 16, [#allocation4], [#allocation3]
  %20 = dma.done [#allocation3], 16
  %21 = sfence
  $region1: #{tpu_custom_call.1} parent=0
    #allocation5 [shape = 'u8[65536]{0}', space=vmem, size = 0x10000, scoped, tag = 'input window, operand 4, single buffered']
    #allocation6 [shape = 's32[1]{0}', space=sflag, size = 0x4, scoped, tag = 'scoped memory for tpu_custom_call.1']
    #allocation7 [shape = 's32[1]{0}', space=sflag, size = 0x4, scoped, tag = 'scoped memory for tpu_custom_call.1']
    #allocation8 [shape = 'u8[32768]{0}', space=vmem, size = 0x8000, scoped, tag = 'input window, operand 5, single buffered']
    #allocation9 [shape = 's32[1]{0}', space=sflag, size = 0x4, scoped, tag = 'scoped memory for tpu_custom_call.1']
    #allocation10 [shape = 'u8[32768]{0}', space=vmem, size = 0x8000, scoped, tag = 'input window, operand 7, single buffered']
    #allocation11 [shape = 'u8[8192]{0}', space=vmem, size = 0x2000, scoped, tag = 'output window, operand 0, single buffered']
    %22 = vsyncpa [#allocation6], 0
    %23 = vsyncpa [#allocation9], 0
    %24 = vsyncpa [#allocation7], 0
    // Predicated region
    $region2: #{tpu_custom_call.1} parent=1 // pred_check
      _
    $region3: #{tpu_custom_call.1} parent=1 // pred_check_branch
      %26 = sbr.rel (0) target = $region5
    $region4: #{tpu_custom_call.1} parent=1 // pred_region
      _
    $region5: #{tpu_custom_call.1} parent=1 // pred_fallthru
      _
    // Predicated region
    $region6: #{tpu_custom_call.1} parent=1 // pred_check
      _
    $region7: #{tpu_custom_call.1} parent=1 // pred_check_branch
      %28 = sbr.rel (0) target = $region9
    $region8: #{tpu_custom_call.1} parent=1 // pred_region
      _
    $region9: #{tpu_custom_call.1} parent=1 // pred_fallthru
      _
    // Predicated region
    $region10: #{tpu_custom_call.1} parent=1 // pred_check
      _
    $region11: #{tpu_custom_call.1} parent=1 // pred_check_branch
      %30 = sbr.rel (0) target = $region13
    $region12: #{tpu_custom_call.1} parent=1 // pred_region
      _
    $region13: #{tpu_custom_call.1} parent=1 // pred_fallthru
      _
    // Predicated region
    $region14: #{tpu_custom_call.1} parent=1 // pred_check
      _
    $region15: #{tpu_custom_call.1} parent=1 // pred_check_branch
      %32 = sbr.rel (0) target = $region17
    $region16: #{tpu_custom_call.1} parent=1 // pred_region
      %s33 = smul.u32 0, 128
      %s34 = sld [smem:[#allocation4 + %s33]]
      %s35 = sadd.s32 %s34, 0
      %p36 = scmp.lt.s32.totalorder %s35, 0
      %s37 = scalar_select %p36, %s35, 0
      %s38 = smul.u32 32, %s37
      %40 = vsyncadd [#allocation6], 0
      %s41 = smul.addr %s38, 4
      %s42 = scalar_lea.hbm %s4, %s41
      %s43 = sshll.u32 %s42, 4
      %s44 = int_to_ptr.hbm [resolvable:$true] %s43
      %s45 = sshll.u32 [#allocation5], 4
      %s46 = int_to_ptr.vmem [resolvable:$true] %s45
      %51 = dma.hbm_to_vmem [thread:$0]  %s44, 2048, %s46, [#allocation6], 64, 64, 4
    $region17: #{tpu_custom_call.1} parent=1 // pred_fallthru
      _
    // Predicated region
    $region18: #{tpu_custom_call.1} parent=1 // pred_check
      _
    $region19: #{tpu_custom_call.1} parent=1 // pred_check_branch
      %53 = sbr.rel (0) target = $region21
    $region20: #{tpu_custom_call.1} parent=1 // pred_region
      %55 = vsyncadd [#allocation9], 0
      %s56 = sshll.u32 %s5, 4
      %s57 = int_to_ptr.hbm [resolvable:$true] %s56
      %s58 = sshll.u32 [#allocation8], 4
      %s59 = int_to_ptr.vmem [resolvable:$true] %s58
      %64 = dma.hbm_to_vmem [thread:$0]  %s57, 1024, %s59, [#allocation9], 64, 64, 4
    $region21: #{tpu_custom_call.1} parent=1 // pred_fallthru
      _
    // Predicated region
    $region22: #{tpu_custom_call.1} parent=1 // pred_check
      _
    $region23: #{tpu_custom_call.1} parent=1 // pred_check_branch
      %66 = sbr.rel (0) target = $region25
    $region24: #{tpu_custom_call.1} parent=1 // pred_region
      _
    $region25: #{tpu_custom_call.1} parent=1 // pred_fallthru
      _
    // Predicated region
    $region26: #{tpu_custom_call.1} parent=1 // pred_check
      _
    $region27: #{tpu_custom_call.1} parent=1 // pred_check_branch
      %68 = sbr.rel (0) target = $region29
    $region28: #{tpu_custom_call.1} parent=1 // pred_region
      %70 = vsyncadd [#allocation9], 0
      %s71 = sshll.u32 %s7, 4
      %s72 = int_to_ptr.hbm [resolvable:$true] %s71
      %s73 = sshll.u32 [#allocation10], 4
      %s74 = int_to_ptr.vmem [resolvable:$true] %s73
      %79 = dma.hbm_to_vmem [thread:$0]  %s72, 1024, %s74, [#allocation9], 64, 64, 4
    $region29: #{tpu_custom_call.1} parent=1 // pred_fallthru
      _
    // Predicated region
    $region30: #{tpu_custom_call.1} parent=1 // pred_check
      _
    $region31: #{tpu_custom_call.1} parent=1 // pred_check_branch
      %81 = sbr.rel (0) target = $region33
    $region32: #{tpu_custom_call.1} parent=1 // pred_region
      _
    $region33: #{tpu_custom_call.1} parent=1 // pred_fallthru
      _
    // Predicated region
    $region34: #{tpu_custom_call.1} parent=1 // pred_check
      _
    $region35: #{tpu_custom_call.1} parent=1 // pred_check_branch
      %83 = sbr.rel (0) target = $region37
    $region36: #{tpu_custom_call.1} parent=1 // pred_region
      %85 = dma.done [#allocation6], 2048
    $region37: #{tpu_custom_call.1} parent=1 // pred_fallthru
      _
    // Predicated region
    $region38: #{tpu_custom_call.1} parent=1 // pred_check
      _
    $region39: #{tpu_custom_call.1} parent=1 // pred_check_branch
      %87 = sbr.rel (0) target = $region41
    $region40: #{tpu_custom_call.1} parent=1 // pred_region
      %89 = dma.done [#allocation9], 1024
    $region41: #{tpu_custom_call.1} parent=1 // pred_fallthru
      _
    // Predicated region
    $region42: #{tpu_custom_call.1} parent=1 // pred_check
      _
    $region43: #{tpu_custom_call.1} parent=1 // pred_check_branch
      %91 = sbr.rel (0) target = $region45
    $region44: #{tpu_custom_call.1} parent=1 // pred_region
      %93 = dma.done [#allocation9], 1024
    $region45: #{tpu_custom_call.1} parent=1 // pred_fallthru
      _
    %s94 = smul.u32 0, 128
    %s95 = sld [smem:[#allocation4 + %s94]]
    %s96 = sadd.s32 %s95, 0
    %p97 = scmp.lt.s32.totalorder %s96, 0
    %s98 = scalar_select %p97, %s96, 0
    %s99 = smul.u32 32, %s98
    %p100 = scmp.eq.s32.totalorder 0, 0
    // Predicated region
    $region46: #{tpu_custom_call.1} parent=1 // pred_check
      %p101 = pneg %p100
    $region47: #{tpu_custom_call.1} parent=1 // pred_check_branch
      %103 = sbr.rel (%p101) target = $region49
    $region48: #{tpu_custom_call.1} parent=1 // pred_region
      %104 = vst [vmem:[#allocation2] sm:$0xff] 0.0
      %105 = vst [vmem:[#allocation2 + $0x8] sm:$0xff] 0.0
    $region49: #{tpu_custom_call.1} parent=1 // pred_fallthru
      _
    %s106 = smul.u32 0, 128
    %s107 = sadd.s32 %s106, 1
    %s108 = sld [smem:[#allocation4 + %s107]]
    %p109 = scmp.lt.s32.totalorder 0, %s108
    // Predicated region
    $region50: #{tpu_custom_call.1} parent=1 // pred_check
      %p110 = pneg %p109
    $region51: #{tpu_custom_call.1} parent=1 // pred_check_branch
      %112 = sbr.rel (%p110) target = $region53
    $region52: #{tpu_custom_call.1} parent=1 // pred_region
      %s113 = sld [smem:[#allocation4 + %s106]]
      %s114 = sadd.s32 %s113, 0
      %s115 = smul.u32 %s114, 256
      %v116 = vlaneseq
      %v117 = vand.u32 %v116, 127
      %v118 = vadd.s32 %v117, 128
      %v119 = vld [vmem:[%s1] sm:$0xff]
      %v120 = vld [vmem:[%s1 + $0x8] sm:$0xff]
      %v121 = vstv %s115
      %v122 = vsub.s32 %v121, %v119
      %v123 = vsub.s32 %v121, %v120
      %124 = vset.pattern.permute.xlu0 0
      %125 = vperm.xlu0 %124, %v122
      %v126 = vpop.permute.xlu0 %125
      %127 = vset.pattern.permute.xlu0 0
      %128 = vperm.xlu0 %127, %v123
      %v129 = vpop.permute.xlu0 %128
      %v130 = vadd.s32 %v117, %v126
      %v131 = vadd.s32 %v118, %v126
      %v132 = vadd.s32 %v117, %v129
      %v133 = vadd.s32 %v118, %v129
      %v134 = vld [vmem:[%s2] sm:$0xff]
      %v135 = vld [vmem:[%s2 + $0x8] sm:$0xff]
      %136 = vset.pattern.permute.xlu0 0
      %137 = vperm.xlu0 %136, %v134
      %v138 = vpop.permute.xlu0 %137
      %139 = vset.pattern.permute.xlu0 0
      %140 = vperm.xlu0 %139, %v135
      %v141 = vpop.permute.xlu0 %140
      %v142 = vadd.s32 %v130, 2147483648
      %v143 = vadd.s32 %v138, 2147483648
      %vm144 = vcmp.lt.s32.totalorder %v142, %v143
      %v145 = vadd.s32 %v131, 2147483648
      %v146 = vadd.s32 %v138, 2147483648
      %vm147 = vcmp.lt.s32.totalorder %v145, %v146
      %v148 = vadd.s32 %v132, 2147483648
      %v149 = vadd.s32 %v141, 2147483648
      %vm150 = vcmp.lt.s32.totalorder %v148, %v149
      %v151 = vadd.s32 %v133, 2147483648
      %v152 = vadd.s32 %v141, 2147483648
      %vm153 = vcmp.lt.s32.totalorder %v151, %v152
      %v154 = vld [vmem:[#allocation2] sm:$0xff]
      %v155 = vld [vmem:[#allocation2 + $0x8] sm:$0xff]
      %v156 = vsel %vm144, 1, 0
      %v157 = vsel %vm147, 1, 0
      %v158 = vsel %vm150, 1, 0
      %v159 = vsel %vm153, 1, 0
      %v160 = vcvt.s32.f32 %v156
      %v161 = vcvt.s32.f32 %v157
      %v162 = vcvt.s32.f32 %v158
      %v163 = vcvt.s32.f32 %v159
      %v164 = vpack.c.bf16 %v162, %v160
      %v165 = vpack.c.bf16 %v163, %v161
      %v166 = vld [vmem:[#allocation5] sm:$0xf]
      %v167 = vld [vmem:[#allocation5 + $0x4] sm:$0xf]
      %v168 = vld [vmem:[#allocation5 + $0x8] sm:$0xf]
      %v169 = vld [vmem:[#allocation5 + $0xc] sm:$0xf]
      %v170 = vld [vmem:[#allocation5 + $0x10] sm:$0xf]
      %v171 = vld [vmem:[#allocation5 + $0x14] sm:$0xf]
      %v172 = vld [vmem:[#allocation5 + $0x18] sm:$0xf]
      %v173 = vld [vmem:[#allocation5 + $0x1c] sm:$0xf]
      %v174 = vld [vmem:[#allocation5 + $0x20] sm:$0xf]
      %v175 = vld [vmem:[#allocation5 + $0x24] sm:$0xf]
      %v176 = vld [vmem:[#allocation5 + $0x28] sm:$0xf]
      %v177 = vld [vmem:[#allocation5 + $0x2c] sm:$0xf]
      %v178 = vld [vmem:[#allocation5 + $0x30] sm:$0xf]
      %v179 = vld [vmem:[#allocation5 + $0x34] sm:$0xf]
      %v180 = vld [vmem:[#allocation5 + $0x38] sm:$0xf]
      %v181 = vld [vmem:[#allocation5 + $0x3c] sm:$0xf]
      %v182 = vld [vmem:[#allocation5 + $0x40] sm:$0xf]
      %v183 = vld [vmem:[#allocation5 + $0x44] sm:$0xf]
      %v184 = vld [vmem:[#allocation5 + $0x48] sm:$0xf]
      %v185 = vld [vmem:[#allocation5 + $0x4c] sm:$0xf]
      %v186 = vld [vmem:[#allocation5 + $0x50] sm:$0xf]
      %v187 = vld [vmem:[#allocation5 + $0x54] sm:$0xf]
      %v188 = vld [vmem:[#allocation5 + $0x58] sm:$0xf]
      %v189 = vld [vmem:[#allocation5 + $0x5c] sm:$0xf]
      %v190 = vld [vmem:[#allocation5 + $0x60] sm:$0xf]
      %v191 = vld [vmem:[#allocation5 + $0x64] sm:$0xf]
      %v192 = vld [vmem:[#allocation5 + $0x68] sm:$0xf]
      %v193 = vld [vmem:[#allocation5 + $0x6c] sm:$0xf]
      %v194 = vld [vmem:[#allocation5 + $0x70] sm:$0xf]
      %v195 = vld [vmem:[#allocation5 + $0x74] sm:$0xf]
      %v196 = vld [vmem:[#allocation5 + $0x78] sm:$0xf]
      %v197 = vld [vmem:[#allocation5 + $0x7c] sm:$0xf]
      %v230 = vunpack.c.l.b16 %v166
      %v231 = vunpack.c.l.b16 %v167
      %v232 = vunpack.c.l.b16 %v168
      %v233 = vunpack.c.l.b16 %v169
      %v234 = vunpack.c.l.b16 %v170
      %v235 = vunpack.c.l.b16 %v171
      %v236 = vunpack.c.l.b16 %v172
      %v237 = vunpack.c.l.b16 %v173
      %v238 = vunpack.c.l.b16 %v174
      %v239 = vunpack.c.l.b16 %v175
      %v240 = vunpack.c.l.b16 %v176
      %v241 = vunpack.c.l.b16 %v177
      %v242 = vunpack.c.l.b16 %v178
      %v243 = vunpack.c.l.b16 %v179
      %v244 = vunpack.c.l.b16 %v180
      %v245 = vunpack.c.l.b16 %v181
      %v246 = vunpack.c.l.b16 %v182
      %v247 = vunpack.c.l.b16 %v183
      %v248 = vunpack.c.l.b16 %v184
      %v249 = vunpack.c.l.b16 %v185
      %v250 = vunpack.c.l.b16 %v186
      %v251 = vunpack.c.l.b16 %v187
      %v252 = vunpack.c.l.b16 %v188
      %v253 = vunpack.c.l.b16 %v189
      %v254 = vunpack.c.l.b16 %v190
      %v255 = vunpack.c.l.b16 %v191
      %v256 = vunpack.c.l.b16 %v192
      %v257 = vunpack.c.l.b16 %v193
      %v258 = vunpack.c.l.b16 %v194
      %v259 = vunpack.c.l.b16 %v195
      %v260 = vunpack.c.l.b16 %v196
      %v261 = vunpack.c.l.b16 %v197
      %v262 = vpack.c.b16 %v231, %v230
      %v263 = vpack.c.b16 %v233, %v232
      %v264 = vpack.c.b16 %v235, %v234
      %v265 = vpack.c.b16 %v237, %v236
      %v266 = vpack.c.b16 %v239, %v238
      %v267 = vpack.c.b16 %v241, %v240
      %v268 = vpack.c.b16 %v243, %v242
      %v269 = vpack.c.b16 %v245, %v244
      %v270 = vpack.c.b16 %v247, %v246
      %v271 = vpack.c.b16 %v249, %v248
      %v272 = vpack.c.b16 %v251, %v250
      %v273 = vpack.c.b16 %v253, %v252
      %v274 = vpack.c.b16 %v255, %v254
      %v275 = vpack.c.b16 %v257, %v256
      %v276 = vpack.c.b16 %v259, %v258
      %v277 = vpack.c.b16 %v261, %v260
      %294 = vmatpush.bf16.msra.mxu0 %v269
      %295 = vmatpush.bf16.msra.mxu0 %v268
      %296 = vmatpush.bf16.msra.mxu0 %v267
      %297 = vmatpush.bf16.msra.mxu0 %v266
      %298 = vmatpush.bf16.msra.mxu0 %v265
      %299 = vmatpush.bf16.msra.mxu0 %v264
      %300 = vmatpush.bf16.msra.mxu0 %v263
      %301 = vmatpush.bf16.msra.mxu0 %v262
      %302 = vmatmul.bf16.gmra.mxu0 %v164
      %v303 = vpop.f32.mrf.mxu0
      %v304 = vadd.f32 0.0, %v303
      %v305 = vpop.f32.mrf.mxu0
      %v306 = vadd.f32 0.0, %v305
      %307 = vdwg.mxu0
      %308 = vmatpush.bf16.msra.mxu0 %v277
      %309 = vmatpush.bf16.msra.mxu0 %v276
      %310 = vmatpush.bf16.msra.mxu0 %v275
      %311 = vmatpush.bf16.msra.mxu0 %v274
      %312 = vmatpush.bf16.msra.mxu0 %v273
      %313 = vmatpush.bf16.msra.mxu0 %v272
      %314 = vmatpush.bf16.msra.mxu0 %v271
      %315 = vmatpush.bf16.msra.mxu0 %v270
      %316 = vmatmul.bf16.gmra.mxu0 %v165
      %v317 = vpop.f32.mrf.mxu0
      %v318 = vadd.f32 %v304, %v317
      %v319 = vpop.f32.mrf.mxu0
      %v320 = vadd.f32 %v306, %v319
      %321 = vdwg.mxu0
      %v322 = vadd.f32 %v154, %v318
      %v323 = vadd.f32 %v155, %v320
      %324 = vst [vmem:[#allocation2] sm:$0xff] %v322
      %325 = vst [vmem:[#allocation2 + $0x8] sm:$0xff] %v323
    $region53: #{tpu_custom_call.1} parent=1 // pred_fallthru
      _
    // Predicated region
    $region54: #{tpu_custom_call.1} parent=1 // pred_check
      %p326 = pneg %p100
    $region55: #{tpu_custom_call.1} parent=1 // pred_check_branch
      %328 = sbr.rel (%p326) target = $region57
    $region56: #{tpu_custom_call.1} parent=1 // pred_region
      %v329 = vld [vmem:[#allocation2] sm:$0xff]
      %v330 = vld [vmem:[#allocation2 + $0x8] sm:$0xff]
      %v331 = vld [vmem:[%s3] sm:$0xff]
      %v332 = vld [vmem:[%s3 + $0x8] sm:$0xff]
      %334 = vset.pattern.permute.xlu0 0
      %335 = vperm.xlu0 %334, %v331
      %v336 = vpop.permute.xlu0 %335
      %339 = vset.pattern.permute.xlu0 0
      %340 = vperm.xlu0 %339, %v332
      %v341 = vpop.permute.xlu0 %340
      %v343 = vmul.f32 %v329, %v336
      %v344 = vmul.f32 %v330, %v341
      %v345 = vpack.c.bf16 %v344, %v343
      %v346 = vld [vmem:[#allocation8] sm:$0xf]
      %v347 = vld [vmem:[#allocation8 + $0x4] sm:$0xf]
      %v348 = vld [vmem:[#allocation8 + $0x8] sm:$0xf]
      %v349 = vld [vmem:[#allocation8 + $0xc] sm:$0xf]
      %v350 = vld [vmem:[#allocation8 + $0x10] sm:$0xf]
      %v351 = vld [vmem:[#allocation8 + $0x14] sm:$0xf]
      %v352 = vld [vmem:[#allocation8 + $0x18] sm:$0xf]
      %v353 = vld [vmem:[#allocation8 + $0x1c] sm:$0xf]
      %v354 = vld [vmem:[#allocation8 + $0x20] sm:$0xf]
      %v355 = vld [vmem:[#allocation8 + $0x24] sm:$0xf]
      %v356 = vld [vmem:[#allocation8 + $0x28] sm:$0xf]
      %v357 = vld [vmem:[#allocation8 + $0x2c] sm:$0xf]
      %v358 = vld [vmem:[#allocation8 + $0x30] sm:$0xf]
      %v359 = vld [vmem:[#allocation8 + $0x34] sm:$0xf]
      %v360 = vld [vmem:[#allocation8 + $0x38] sm:$0xf]
      %v361 = vld [vmem:[#allocation8 + $0x3c] sm:$0xf]
      %v362 = vld [vmem:[%s6] sm:$0x1]
      %v364 = vperm.slane %v362, 0
      %v382 = vunpack.c.l.b16 %v346
      %v383 = vunpack.c.l.b16 %v347
      %v384 = vunpack.c.l.b16 %v348
      %v385 = vunpack.c.l.b16 %v349
      %v386 = vunpack.c.l.b16 %v350
      %v387 = vunpack.c.l.b16 %v351
      %v388 = vunpack.c.l.b16 %v352
      %v389 = vunpack.c.l.b16 %v353
      %v390 = vunpack.c.l.b16 %v354
      %v391 = vunpack.c.l.b16 %v355
      %v392 = vunpack.c.l.b16 %v356
      %v393 = vunpack.c.l.b16 %v357
      %v394 = vunpack.c.l.b16 %v358
      %v395 = vunpack.c.l.b16 %v359
      %v396 = vunpack.c.l.b16 %v360
      %v397 = vunpack.c.l.b16 %v361
      %v398 = vpack.c.b16 %v383, %v382
      %v399 = vpack.c.b16 %v385, %v384
      %v400 = vpack.c.b16 %v387, %v386
      %v401 = vpack.c.b16 %v389, %v388
      %v402 = vpack.c.b16 %v391, %v390
      %v403 = vpack.c.b16 %v393, %v392
      %v404 = vpack.c.b16 %v395, %v394
      %v405 = vpack.c.b16 %v397, %v396
      %414 = vmatpush.bf16.msra.mxu0 %v405
      %415 = vmatpush.bf16.msra.mxu0 %v404
      %416 = vmatpush.bf16.msra.mxu0 %v403
      %417 = vmatpush.bf16.msra.mxu0 %v402
      %418 = vmatpush.bf16.msra.mxu0 %v401
      %419 = vmatpush.bf16.msra.mxu0 %v400
      %420 = vmatpush.bf16.msra.mxu0 %v399
      %421 = vmatpush.bf16.msra.mxu0 %v398
      %422 = vmatmul.bf16.gmra.mxu0 %v345
      %v423 = vpop.f32.mrf.mxu0
      %v424 = vadd.f32 %v364, %v423
      %v425 = vpop.f32.mrf.mxu0
      %v426 = vadd.f32 %v364, %v425
      %427 = vdwg.mxu0
      %vm428 = vcmp.gt.f32.partialorder %v424, 0.0
      %vm429 = vcmp.gt.f32.partialorder %v426, 0.0
      %v430 = vmul.f32 %v424, 0.01
      %v431 = vmul.f32 %v426, 0.01
      %v432 = vsel %vm428, %v424, %v430
      %v433 = vsel %vm429, %v426, %v431
      %v434 = vpack.c.bf16 %v433, %v432
      %v435 = vld [vmem:[#allocation10] sm:$0xf]
      %v436 = vld [vmem:[#allocation10 + $0x4] sm:$0xf]
      %v437 = vld [vmem:[#allocation10 + $0x8] sm:$0xf]
      %v438 = vld [vmem:[#allocation10 + $0xc] sm:$0xf]
      %v439 = vld [vmem:[#allocation10 + $0x10] sm:$0xf]
      %v440 = vld [vmem:[#allocation10 + $0x14] sm:$0xf]
      %v441 = vld [vmem:[#allocation10 + $0x18] sm:$0xf]
      %v442 = vld [vmem:[#allocation10 + $0x1c] sm:$0xf]
      %v443 = vld [vmem:[#allocation10 + $0x20] sm:$0xf]
      %v444 = vld [vmem:[#allocation10 + $0x24] sm:$0xf]
      %v445 = vld [vmem:[#allocation10 + $0x28] sm:$0xf]
      %v446 = vld [vmem:[#allocation10 + $0x2c] sm:$0xf]
      %v447 = vld [vmem:[#allocation10 + $0x30] sm:$0xf]
      %v448 = vld [vmem:[#allocation10 + $0x34] sm:$0xf]
      %v449 = vld [vmem:[#allocation10 + $0x38] sm:$0xf]
      %v450 = vld [vmem:[#allocation10 + $0x3c] sm:$0xf]
      %v451 = vld [vmem:[%s8] sm:$0x1]
      %v453 = vperm.slane %v451, 0
      %v471 = vunpack.c.l.b16 %v435
      %v472 = vunpack.c.l.b16 %v436
      %v473 = vunpack.c.l.b16 %v437
      %v474 = vunpack.c.l.b16 %v438
      %v475 = vunpack.c.l.b16 %v439
      %v476 = vunpack.c.l.b16 %v440
      %v477 = vunpack.c.l.b16 %v441
      %v478 = vunpack.c.l.b16 %v442
      %v479 = vunpack.c.l.b16 %v443
      %v480 = vunpack.c.l.b16 %v444
      %v481 = vunpack.c.l.b16 %v445
      %v482 = vunpack.c.l.b16 %v446
      %v483 = vunpack.c.l.b16 %v447
      %v484 = vunpack.c.l.b16 %v448
      %v485 = vunpack.c.l.b16 %v449
      %v486 = vunpack.c.l.b16 %v450
      %v487 = vpack.c.b16 %v472, %v471
      %v488 = vpack.c.b16 %v474, %v473
      %v489 = vpack.c.b16 %v476, %v475
      %v490 = vpack.c.b16 %v478, %v477
      %v491 = vpack.c.b16 %v480, %v479
      %v492 = vpack.c.b16 %v482, %v481
      %v493 = vpack.c.b16 %v484, %v483
      %v494 = vpack.c.b16 %v486, %v485
      %503 = vmatpush.bf16.msra.mxu0 %v494
      %504 = vmatpush.bf16.msra.mxu0 %v493
      %505 = vmatpush.bf16.msra.mxu0 %v492
      %506 = vmatpush.bf16.msra.mxu0 %v491
      %507 = vmatpush.bf16.msra.mxu0 %v490
      %508 = vmatpush.bf16.msra.mxu0 %v489
      %509 = vmatpush.bf16.msra.mxu0 %v488
      %510 = vmatpush.bf16.msra.mxu0 %v487
      %511 = vmatmul.bf16.gmra.mxu0 %v434
      %v512 = vpop.f32.mrf.mxu0
      %v513 = vadd.f32 %v453, %v512
      %v514 = vpop.f32.mrf.mxu0
      %v515 = vadd.f32 %v453, %v514
      %516 = vdwg.mxu0
      %517 = vst [vmem:[#allocation11] sm:$0xff] %v513
      %518 = vst [vmem:[#allocation11 + $0x8] sm:$0xff] %v515
    $region57: #{tpu_custom_call.1} parent=1 // pred_fallthru
      _
    // Predicated region
    $region58: #{tpu_custom_call.1} parent=1 // pred_check
      _
    $region59: #{tpu_custom_call.1} parent=1 // pred_check_branch
      %520 = sbr.rel (0) target = $region61
    $region60: #{tpu_custom_call.1} parent=1 // pred_region
      %522 = vsyncadd [#allocation7], 0
      %s523 = sshll.u32 [#allocation11], 4
      %s524 = int_to_ptr.vmem [resolvable:$true] %s523
      %s525 = sshll.u32 %s9, 4
      %s526 = int_to_ptr.hbm [resolvable:$true] %s525
      %531 = dma.vmem_to_hbm [thread:$0]  %s524, 256, %s526, [#allocation7], 128, 128, 8
    $region61: #{tpu_custom_call.1} parent=1 // pred_fallthru
      _
    // Predicated region
    $region62: #{tpu_custom_call.1} parent=1 // pred_check
      _
    $region63: #{tpu_custom_call.1} parent=1 // pred_check_branch
      %533 = sbr.rel (0) target = $region65
    $region64: #{tpu_custom_call.1} parent=1 // pred_region
      %535 = dma.done [#allocation7], 256
    $region65: #{tpu_custom_call.1} parent=1 // pred_fallthru
      _
    %536 = vsyncpa [#allocation6], 1
    %537 = vsyncpa [#allocation9], 1
    %538 = vsyncpa [#allocation7], 1

</llo_original>
